<compile_context>
chip_gen: v7x
topology: tpu7x:2x2x1
jax: 0.10.0
libtpu: 0.0.40
codegen_flags: <defaults>
</compile_context>

<pallas_src>
import functools

import numpy as np
import jax
import jax.numpy as jnp
from jax.experimental import pallas as pl
from jax.experimental.pallas import tpu as pltpu

try:
    from scipy.optimize import linear_sum_assignment
    _HAVE_SCIPY = True
except ImportError:  # pragma: no cover
    _HAVE_SCIPY = False


# ------------------------------ helpers ------------------------------------ #

def _round_up(x, m):
    return ((x + m - 1) // m) * m


def _cdist_l1(boxes, tgt_t):
    """Pairwise L1 distance. boxes: (tq, 4), tgt_t: (4, T) -> (tq, T)."""
    d = jnp.abs(boxes[:, 0:1] - tgt_t[0:1, :])
    for k in range(1, 4):
        d = d + jnp.abs(boxes[:, k:k + 1] - tgt_t[k:k + 1, :])
    return d


def _neg_giou_w(boxes_cxcywh, tgt_xyxy, tgt_area, w_giou, eps=1e-7):
    """Pairwise  -w_giou * GIoU  (weight folded in; valid for w_giou >= 0).

    boxes: (tq, 4) cxcywh;  target xyxy (4, T), area (1, T) precomputed."""
    cx = boxes_cxcywh[:, 0:1]
    cy = boxes_cxcywh[:, 1:2]
    bw = boxes_cxcywh[:, 2:3]
    bh = boxes_cxcywh[:, 3:4]
    x0, y0 = cx - 0.5 * bw, cy - 0.5 * bh
    x1, y1 = cx + 0.5 * bw, cy + 0.5 * bh
    area_p = bw * bh                                          # (tq, 1)

    tx0 = tgt_xyxy[0:1, :]
    ty0 = tgt_xyxy[1:2, :]
    tx1 = tgt_xyxy[2:3, :]
    ty1 = tgt_xyxy[3:4, :]

    iw = jnp.maximum(jnp.minimum(x1, tx1) - jnp.maximum(x0, tx0), 0.0)
    ih = jnp.maximum(jnp.minimum(y1, ty1) - jnp.maximum(y0, ty0), 0.0)
    inter = iw * ih
    union = area_p + tgt_area - inter                         # (tq, T)
    iou = inter * pl.reciprocal(jnp.maximum(union, eps), approx=True)

    # Enclosing-box extents are >= 0 whenever both box sets have non-negative
    # widths/heights (true for model outputs and zero padding) -> no clamps.
    ew = jnp.maximum(tx1, x1) - jnp.minimum(tx0, x0)
    eh = jnp.maximum(ty1, y1) - jnp.minimum(ty0, y0)
    area_c = ew * eh
    #  -w * giou = w * ((area_c - union)/area_c - iou)
    return w_giou * ((area_c - union)
                     * pl.reciprocal(jnp.maximum(area_c, eps), approx=True) - iou)


# ----------------------------- Pallas kernel ------------------------------- #

def _matcher_cost_kernel(n_obj_cls, w_bbox, w_giou,
                         cls_logits_ref, sub_box_ref, obj_box_ref,
                         rhs_cls_ref, tgt_boxes_ref, tgt_rows_ref,
                         c_ref):
    f32 = jnp.float32
    tr = tgt_rows_ref[...]                                    # (8, T)
    tb = tgt_boxes_ref[...]                                   # (16, T)

    # ---- fused object-class + verb-class cost in ONE MXU matmul.
    # cls_logits = [obj_logits | verb_logits] along K. Softmax is normalized on
    # the small (tq, C_obj) operand; sigmoid uses the EUP reciprocal; a lane
    # mask picks the right nonlinearity per K column (avoids in-kernel concat).
    allv = cls_logits_ref[...]                                # (tq, C_obj + C_verb)
    col = jax.lax.broadcasted_iota(jnp.int32, allv.shape, 1)
    is_obj = col < n_obj_cls
    obj_masked = jnp.where(is_obj, allv, -1e30)
    e = jnp.exp(obj_masked - jnp.max(obj_masked, axis=-1, keepdims=True))
    p_obj = e * pl.reciprocal(jnp.sum(e, axis=-1, keepdims=True), approx=True)
    p_verb = pl.reciprocal(1.0 + jnp.exp(-allv), approx=True)
    lhs = jnp.where(is_obj, p_obj, p_verb).astype(jnp.bfloat16)
    # rhs = [ -w_obj * onehot ; -0.5*w_verb*(tv/pos - (1-tv)/neg) ], bias in tr[4]
    acc = jnp.dot(lhs, rhs_cls_ref[...], preferred_element_type=f32) + tr[4:5, :]

    # ---- L1 box cost (w_bbox folded into both operands; target rows pre-scaled
    # in the wrapper, pred boxes scaled here on the tiny (tq,4) slabs).
    # L1 temporaries die before GIoU starts (lower peak VMEM/vreg pressure).
    sub = sub_box_ref[...]
    obj = obj_box_ref[...]
    mask_any = tr[2:3, :]
    cost_bbox = jnp.maximum(
        _cdist_l1(w_bbox * sub, tb[0:4, :]),
        _cdist_l1(w_bbox * obj, tb[4:8, :]) * mask_any)
    acc = acc + cost_bbox

    # ---- GIoU cost, -w_giou folded inside each term (valid for w_giou >= 0)
    g_sub = _neg_giou_w(sub, tb[8:12, :], tr[0:1, :], w_giou)
    g_obj = (_neg_giou_w(obj, tb[12:16, :], tr[1:2, :], w_giou)
             + g_sub * tr[3:4, :])
    c_ref[...] = acc + jnp.maximum(g_sub, g_obj)


# ------------------------------ JAX wrapper -------------------------------- #

def _vmem_sizing():
    """(temp/tile sizing budget, explicit scoped-VMEM limit) in bytes."""
    try:
        info = pltpu.get_tpu_info()
        vmem_bytes = int(getattr(info, "vmem_capacity_bytes", 0)) or (64 << 20)
    except Exception:
        vmem_bytes = 64 << 20     # conservative: fits v7x's 64 MiB per TensorCore
    budget = min(int(0.60 * vmem_bytes), 90 << 20)
    vmem_limit = min(int(0.85 * vmem_bytes), 110 << 20)
    return budget, vmem_limit


def compute_cost_blocks(pred_obj_logits, pred_verb_logits,
                        pred_sub_boxes, pred_obj_boxes,
                        obj_labels_list, verb_labels_list,
                        sub_boxes_list, obj_boxes_list,
                        *, cost_obj_class=1.0, cost_verb_class=1.0,
                        cost_bbox=1.0, cost_giou=1.0, tq_max=1024):
    """Per-image (block-diagonal) HOI matching cost blocks.

    Returns (cost_blocks, sizes) with cost_blocks of shape (bs, nq, t_pad);
    only columns [:sizes[i]] of image i are meaningful (rest is padding)."""
    f32 = jnp.float32
    bs, nq, n_obj_cls = pred_obj_logits.shape
    n_verb_cls = pred_verb_logits.shape[-1]
    n_cls = n_obj_cls + n_verb_cls
    sizes = [int(x.shape[0]) for x in obj_labels_list]
    t_max = max(sizes) if sizes else 0
    if t_max == 0:
        return jnp.zeros((bs, nq, 0), f32), sizes

    t_pad = _round_up(t_max, 128)     # lane-dense target axis

    # ---- per-image padded target stacks (each image only sees its own targets)
    def pad_rows(x):
        pad = ((0, t_pad - x.shape[0]),) + ((0, 0),) * (x.ndim - 1)
        return jnp.pad(x.astype(f32), pad)

    labels = jnp.stack([jnp.pad(lab.astype(jnp.int32),
                                (0, t_pad - lab.shape[0]), constant_values=-1)
                        for lab in obj_labels_list])                   # (bs, T)
    tv = jnp.stack([pad_rows(v) for v in verb_labels_list])            # (bs, T, Cv)
    tsub = jnp.stack([pad_rows(b) for b in sub_boxes_list])            # (bs, T, 4)
    tobj = jnp.stack([pad_rows(b) for b in obj_boxes_list])            # (bs, T, 4)

    # --- object class: (-w_obj) folded into the transposed one-hot (bf16 MXU RHS)
    onehot_neg = (-float(cost_obj_class)
                  * jax.nn.one_hot(labels, n_obj_cls, dtype=f32))      # (bs, T, Co)
    onehot_neg = jnp.transpose(onehot_neg, (0, 2, 1))                  # (bs, Co, T)

    # --- verb class, fused:  w_verb*cost_verb = p_verb @ R + bias
    tv_t = jnp.transpose(tv, (0, 2, 1))                                # (bs, Cv, T)
    pos_den = jnp.sum(tv_t, axis=1, keepdims=True) + 1e-4
    neg_sum = jnp.sum(1.0 - tv_t, axis=1, keepdims=True)
    neg_den = neg_sum + 1e-4
    vscale = -0.5 * float(cost_verb_class)
    verb_r = vscale * (tv_t / pos_den - (1.0 - tv_t) / neg_den)
    verb_bias = vscale * (neg_sum / neg_den)                           # (bs, 1, T)

    rhs_cls = jnp.concatenate([onehot_neg, verb_r], axis=1).astype(jnp.bfloat16)

    # --- target boxes: cxcywh pre-scaled by w_bbox (L1), xyxy/areas (GIoU), masks
    tsub_t = jnp.transpose(tsub, (0, 2, 1))                            # (bs, 4, T)
    tobj_t = jnp.transpose(tobj, (0, 2, 1))

    def to_xyxy_t(b):
        cx, cy, w, h = b[:, 0:1], b[:, 1:2], b[:, 2:3], b[:, 3:4]
        return jnp.concatenate([cx - 0.5 * w, cy - 0.5 * h,
                                cx + 0.5 * w, cy + 0.5 * h], axis=1)

    tsub_xyxy = to_xyxy_t(tsub_t)
    tobj_xyxy = to_xyxy_t(tobj_t)
    area_sub = tsub_t[:, 2:3] * tsub_t[:, 3:4]
    area_obj = tobj_t[:, 2:3] * tobj_t[:, 3:4]
    mask_any = jnp.any(tobj_t != 0.0, axis=1, keepdims=True).astype(f32)
    mask_allzero = 1.0 - mask_any

    wb = float(cost_bbox)
    tgt_boxes = jnp.concatenate([wb * tsub_t, wb * tobj_t,
                                 tsub_xyxy, tobj_xyxy], axis=1)        # (bs, 16, T)
    tgt_rows = jnp.concatenate([area_sub, area_obj, mask_any, mask_allzero,
                                verb_bias, jnp.zeros((bs, 3, t_pad), f32)],
                               axis=1)                                 # (bs, 8, T)

    # ---- generation-aware q-tile sizing (fits v7x's 64 MiB, uses v5e/v6e's 128)
    budget, vmem_limit = _vmem_sizing()
    fixed = 2 * (n_cls * t_pad * 2 + (16 + 8) * t_pad * 4)   # resident target ops (x2 buf)
    per_tq = (10 + 2) * t_pad * 4 + 2 * (n_cls + 8) * 4      # ~10 live slabs + out bufs + in tiles
    tq_cap = max(8, ((budget - fixed) // per_tq) // 8 * 8)
    tq = min(tq_max, tq_cap, _round_up(nq, 8))
    if bs == 1 and nq > 8:
        # keep >= 2 "parallel" grid steps so both v7x TensorCores get work
        tq = min(tq, _round_up((nq + 1) // 2, 8))
    nq_pad = _round_up(nq, tq)

    def pad_q(x):
        return jnp.pad(x.astype(f32), ((0, 0), (0, nq_pad - nq), (0, 0)))

    cls_logits = pad_q(jnp.concatenate(
        [pred_obj_logits.astype(f32), pred_verb_logits.astype(f32)], axis=-1))
    sub_boxes = pad_q(pred_sub_boxes)
    obj_boxes = pad_q(pred_obj_boxes)

    kernel = functools.partial(_matcher_cost_kernel,
                               int(n_obj_cls), wb, float(cost_giou))

    grid = (bs, nq_pad // tq)
    c = pl.pallas_call(
        kernel,
        out_shape=jax.ShapeDtypeStruct((bs, nq_pad, t_pad), f32),
        grid=grid,
        in_specs=[
            pl.BlockSpec((None, tq, n_cls), lambda b, qi: (b, qi, 0)),
            pl.BlockSpec((None, tq, 4), lambda b, qi: (b, qi, 0)),
            pl.BlockSpec((None, tq, 4), lambda b, qi: (b, qi, 0)),
            pl.BlockSpec((None, n_cls, t_pad), lambda b, qi: (b, 0, 0)),
            pl.BlockSpec((None, 16, t_pad), lambda b, qi: (b, 0, 0)),
            pl.BlockSpec((None, 8, t_pad), lambda b, qi: (b, 0, 0)),
        ],
        out_specs=pl.BlockSpec((None, tq, t_pad), lambda b, qi: (b, qi, 0)),
        compiler_params=pltpu.CompilerParams(
            dimension_semantics=("parallel", "parallel"),
            vmem_limit_bytes=vmem_limit),
    )(cls_logits, sub_boxes, obj_boxes, rhs_cls, tgt_boxes, tgt_rows)

    return c[:, :nq, :], sizes


def hungarian_matcher_hoi(outputs, targets, *, cost_obj_class=1.0,
                          cost_verb_class=1.0, cost_bbox=1.0, cost_giou=1.0,
                          cost_matching=1.0, use_matching=False):
    # TODO(synk): use_matching branch (pred_matching_logits gather cost) not implemented.
    del cost_matching, use_matching
    c_blocks, sizes = compute_cost_blocks(
        outputs['pred_obj_logits'], outputs['pred_verb_logits'],
        outputs['pred_sub_boxes'], outputs['pred_obj_boxes'],
        [v['obj_labels'] for v in targets],
        [v['verb_labels'] for v in targets],
        [v['sub_boxes'] for v in targets],
        [v['obj_boxes'] for v in targets],
        cost_obj_class=cost_obj_class, cost_verb_class=cost_verb_class,
        cost_bbox=cost_bbox, cost_giou=cost_giou)

    indices = None
    if _HAVE_SCIPY and c_blocks.shape[-1] > 0:
        # block-diagonal blocks only -> ~bs x fewer D2H bytes than the full matrix
        c_host = np.asarray(jax.block_until_ready(c_blocks))
        indices = []
        for i, s in enumerate(sizes):
            row, col = linear_sum_assignment(c_host[i, :, :s])
            indices.append((np.asarray(row, np.int64), np.asarray(col, np.int64)))
    elif _HAVE_SCIPY:
        indices = [(np.zeros((0,), np.int64), np.zeros((0,), np.int64)) for _ in sizes]
    # TODO(synk): Hungarian assignment has no Pallas equivalent; done on host via scipy.
    return {'indices': indices, 'cost_blocks': c_blocks, 'sizes': sizes}


# ------------------------------ pure-JAX reference ------------------------- #

def _ref_cost_matrix(pred_obj_logits, pred_verb_logits, pred_sub_boxes,
                     pred_obj_boxes, tgt_obj_labels, tgt_verb_labels,
                     tgt_sub_boxes, tgt_obj_boxes):
    bs, nq, _ = pred_obj_logits.shape
    q = bs * nq
    p_obj = jax.nn.softmax(pred_obj_logits.reshape(q, -1), axis=-1)
    cost_obj_class = -p_obj[:, tgt_obj_labels]
    p_verb = jax.nn.sigmoid(pred_verb_logits.reshape(q, -1))
    tv_t = tgt_verb_labels.T
    cost_verb_class = -(p_verb @ tv_t / (tv_t.sum(0, keepdims=True) + 1e-4)
                        + (1 - p_verb) @ (1 - tv_t)
                        / ((1 - tv_t).sum(0, keepdims=True) + 1e-4)) / 2
    sub = pred_sub_boxes.reshape(q, 4)
    obj = pred_obj_boxes.reshape(q, 4)
    cost_sub_bbox = jnp.abs(sub[:, None, :] - tgt_sub_boxes[None, :, :]).sum(-1)
    mask_any = jnp.any(tgt_obj_boxes != 0, axis=1)
    cost_obj_bbox = (jnp.abs(obj[:, None, :] - tgt_obj_boxes[None, :, :]).sum(-1)
                     * mask_any[None, :])
    cost_bbox = jnp.maximum(cost_sub_bbox, cost_obj_bbox)

    def to_xyxy(b):
        cx, cy, w, h = b[..., 0], b[..., 1], b[..., 2], b[..., 3]
        return jnp.stack([cx - 0.5 * w, cy - 0.5 * h,
                          cx + 0.5 * w, cy + 0.5 * h], axis=-1)

    def giou(b1, b2):
        a1 = (b1[:, 2] - b1[:, 0]) * (b1[:, 3] - b1[:, 1])
        a2 = (b2[:, 2] - b2[:, 0]) * (b2[:, 3] - b2[:, 1])
        lt = jnp.maximum(b1[:, None, :2], b2[None, :, :2])
        rb = jnp.minimum(b1[:, None, 2:], b2[None, :, 2:])
        wh = jnp.clip(rb - lt, 0)
        inter = wh[..., 0] * wh[..., 1]
        union = a1[:, None] + a2[None, :] - inter
        iou = inter / union
        lt2 = jnp.minimum(b1[:, None, :2], b2[None, :, :2])
        rb2 = jnp.maximum(b1[:, None, 2:], b2[None, :, 2:])
        wh2 = jnp.clip(rb2 - lt2, 0)
        area = wh2[..., 0] * wh2[..., 1]
        return iou - (area - union) / area

    cost_sub_giou = -giou(to_xyxy(sub), to_xyxy(tgt_sub_boxes))
    cost_obj_giou = (-giou(to_xyxy(obj), to_xyxy(tgt_obj_boxes))
                     + cost_sub_giou * jnp.all(tgt_obj_boxes == 0, axis=1)[None, :])
    cost_giou = jnp.maximum(cost_sub_giou, cost_obj_giou)
    c = cost_obj_class + cost_verb_class + cost_bbox + cost_giou
    return c.reshape(bs, nq, -1)


# ---------------------------------- demo ----------------------------------- #

if __name__ == "__main__":
    key = jax.random.PRNGKey(0)
    bs, nq = 2, 8
    n_obj_cls, n_verb_cls = 12, 10
    sizes_demo = [3, 5]
    T = sum(sizes_demo)
    keys = jax.random.split(key, 8)

    def rand_boxes(k, lead):
        ck, wk = jax.random.split(k)
        c = jax.random.uniform(ck, lead + (2,), minval=0.25, maxval=0.75)
        wh = jax.random.uniform(wk, lead + (2,), minval=0.05, maxval=0.3)
        return jnp.concatenate([c, wh], axis=-1).astype(jnp.float32)

    outputs = {
        'pred_obj_logits': jax.random.normal(keys[0], (bs, nq, n_obj_cls), jnp.float32),
        'pred_verb_logits': jax.random.normal(keys[1], (bs, nq, n_verb_cls), jnp.float32),
        'pred_sub_boxes': rand_boxes(keys[2], (bs, nq)),
        'pred_obj_boxes': rand_boxes(keys[3], (bs, nq)),
    }
    tgt_obj_labels = jax.random.randint(keys[4], (T,), 0, n_obj_cls)
    tgt_verb_labels = (jax.random.uniform(keys[5], (T, n_verb_cls)) < 0.3).astype(jnp.float32)
    tgt_sub_boxes = rand_boxes(keys[6], (T,))
    tgt_obj_boxes = rand_boxes(keys[7], (T,))
    tgt_obj_boxes = tgt_obj_boxes.at[2].set(0.0)  # exercise the "no object box" mask

    targets = []
    off = 0
    for s in sizes_demo:
        targets.append({'obj_labels': tgt_obj_labels[off:off + s],
                        'verb_labels': tgt_verb_labels[off:off + s],
                        'sub_boxes': tgt_sub_boxes[off:off + s],
                        'obj_boxes': tgt_obj_boxes[off:off + s]})
        off += s

    result = hungarian_matcher_hoi(outputs, targets)
    c_blocks = jax.block_until_ready(result['cost_blocks'])

    c_ref = _ref_cost_matrix(outputs['pred_obj_logits'], outputs['pred_verb_logits'],
                             outputs['pred_sub_boxes'], outputs['pred_obj_boxes'],
                             tgt_obj_labels, tgt_verb_labels,
                             tgt_sub_boxes, tgt_obj_boxes)
    # bf16 MXU operands + approx (EUP) reciprocals perturb values slightly vs the
    # exact f32 reference; compare only the per-image block-diagonal entries.
    c_blocks_np = np.asarray(c_blocks)
    c_ref_np = np.asarray(c_ref)
    off = 0
    for i, s in enumerate(result['sizes']):
        np.testing.assert_allclose(c_blocks_np[i, :, :s], c_ref_np[i, :, off:off + s],
                                   rtol=5e-2, atol=5e-2)
        off += s
    print("KERNEL_OK")
</pallas_src>

<mosaic_0001>
module attributes {stable_mosaic.version = 11 : i64} {
  func.func @_matcher_cost_kernel(%arg0: i32, %arg1: i32, %arg2: memref<1x8x22xf32, #tpu.memory_space<vmem>>, %arg3: memref<1x8x4xf32, #tpu.memory_space<vmem>>, %arg4: memref<1x8x4xf32, #tpu.memory_space<vmem>>, %arg5: memref<1x22x128xbf16, #tpu.memory_space<vmem>>, %arg6: memref<1x16x128xf32, #tpu.memory_space<vmem>>, %arg7: memref<1x8x128xf32, #tpu.memory_space<vmem>>, %arg8: memref<1x8x128xf32, #tpu.memory_space<vmem>>) attributes {dimension_semantics = [#tpu.dimension_semantics<parallel>, #tpu.dimension_semantics<parallel>], iteration_bounds = array<i64: 2, 1>, scalar_prefetch = 0 : i64, scratch_operands = 0 : i64, tpu.core_type = #tpu.core_type<tc>, window_params = [{transform_indices = @transform_0, window_bounds = array<i64: 1, 8, 22>}, {transform_indices = @transform_1, window_bounds = array<i64: 1, 8, 4>}, {transform_indices = @transform_2, window_bounds = array<i64: 1, 8, 4>}, {transform_indices = @transform_3, window_bounds = array<i64: 1, 22, 128>}, {transform_indices = @transform_4, window_bounds = array<i64: 1, 16, 128>}, {transform_indices = @transform_5, window_bounds = array<i64: 1, 8, 128>}, {transform_indices = @transform_6, window_bounds = array<i64: 1, 8, 128>}]} {
    %c0 = arith.constant 0 : index
    %c0_0 = arith.constant 0 : index
    %c0_1 = arith.constant 0 : index
    %0 = vector.load %arg7[%c0, %c0_0, %c0_1] : memref<1x8x128xf32, #tpu.memory_space<vmem>>, vector<1x8x128xf32>
    %1 = vector.shape_cast %0 : vector<1x8x128xf32> to vector<8x128xf32>
    %c0_2 = arith.constant 0 : index
    %c0_3 = arith.constant 0 : index
    %c0_4 = arith.constant 0 : index
    %2 = vector.load %arg6[%c0_2, %c0_3, %c0_4] : memref<1x16x128xf32, #tpu.memory_space<vmem>>, vector<1x16x128xf32>
    %3 = vector.shape_cast %2 : vector<1x16x128xf32> to vector<16x128xf32>
    %c0_5 = arith.constant 0 : index
    %c0_6 = arith.constant 0 : index
    %c0_7 = arith.constant 0 : index
    %4 = vector.load %arg2[%c0_5, %c0_6, %c0_7] : memref<1x8x22xf32, #tpu.memory_space<vmem>>, vector<1x8x22xf32>
    %5 = vector.shape_cast %4 : vector<1x8x22xf32> to vector<8x22xf32>
    %6 = tpu.iota {dimensions = array<i32: 1>} : vector<8x22xi32>
    %c12_i32 = arith.constant 12 : i32
    %7 = vector.broadcast %c12_i32 : i32 to vector<8x22xi32>
    %8 = arith.cmpi slt, %6, %7 : vector<8x22xi32>
    %cst = arith.constant -1.000000e+30 : f32
    %9 = vector.broadcast %cst : f32 to vector<8x22xf32>
    %10 = arith.select %8, %5, %9 : vector<8x22xi1>, vector<8x22xf32>
    %cst_8 = arith.constant dense<0xFF800000> : vector<8xf32>
    %11 = vector.multi_reduction <maximumf>, %10, %cst_8 [1] : vector<8x22xf32> to vector<8xf32>
    %12 = vector.shape_cast %11 : vector<8xf32> to vector<8x1xf32>
    %13 = vector.broadcast %12 : vector<8x1xf32> to vector<8x22xf32>
    %14 = arith.subf %10, %13 : vector<8x22xf32>
    %15 = math.exp %14 : vector<8x22xf32>
    %cst_9 = arith.constant dense<0.000000e+00> : vector<8xf32>
    %16 = vector.multi_reduction <add>, %15, %cst_9 [1] : vector<8x22xf32> to vector<8xf32>
    %17 = vector.shape_cast %16 : vector<8xf32> to vector<8x1xf32>
    %18 = tpu.reciprocal %17 {approx = true} : vector<8x1xf32> -> vector<8x1xf32>
    %19 = vector.broadcast %18 : vector<8x1xf32> to vector<8x22xf32>
    %20 = arith.mulf %15, %19 : vector<8x22xf32>
    %cst_10 = arith.constant 0.000000e+00 : f32
    %21 = vector.broadcast %cst_10 : f32 to vector<8x22xf32>
    %22 = arith.subf %21, %5 : vector<8x22xf32>
    %23 = math.exp %22 : vector<8x22xf32>
    %cst_11 = arith.constant 1.000000e+00 : f32
    %24 = vector.broadcast %cst_11 : f32 to vector<8x22xf32>
    %25 = arith.addf %24, %23 : vector<8x22xf32>
    %26 = tpu.reciprocal %25 {approx = true} : vector<8x22xf32> -> vector<8x22xf32>
    %27 = arith.select %8, %20, %26 : vector<8x22xi1>, vector<8x22xf32>
    %28 = arith.truncf %27 : vector<8x22xf32> to vector<8x22xbf16>
    %c0_12 = arith.constant 0 : index
    %c0_13 = arith.constant 0 : index
    %c0_14 = arith.constant 0 : index
    %29 = vector.load %arg5[%c0_12, %c0_13, %c0_14] : memref<1x22x128xbf16, #tpu.memory_space<vmem>>, vector<1x22x128xbf16>
    %30 = vector.shape_cast %29 : vector<1x22x128xbf16> to vector<22x128xbf16>
    %cst_15 = arith.constant dense<0.000000e+00> : vector<8x128xf32>
    %31 = tpu.matmul %28, %30, %cst_15 {dimension_numbers = #tpu.dot_dimension_numbers<[1], [0], [0], [1], [0, 0, 1, 1], [], []>} : vector<8x22xbf16>, vector<22x128xbf16>, vector<8x128xf32> -> vector<8x128xf32>
    %32 = vector.extract_strided_slice %1 {offsets = [4, 0], sizes = [1, 128], strides = [1, 1]} : vector<8x128xf32> to vector<1x128xf32>
    %33 = vector.broadcast %32 : vector<1x128xf32> to vector<8x128xf32>
    %34 = arith.addf %31, %33 : vector<8x128xf32>
    %c0_16 = arith.constant 0 : index
    %c0_17 = arith.constant 0 : index
    %c0_18 = arith.constant 0 : index
    %35 = vector.load %arg3[%c0_16, %c0_17, %c0_18] : memref<1x8x4xf32, #tpu.memory_space<vmem>>, vector<1x8x4xf32>
    %36 = vector.shape_cast %35 : vector<1x8x4xf32> to vector<8x4xf32>
    %c0_19 = arith.constant 0 : index
    %c0_20 = arith.constant 0 : index
    %c0_21 = arith.constant 0 : index
    %37 = vector.load %arg4[%c0_19, %c0_20, %c0_21] : memref<1x8x4xf32, #tpu.memory_space<vmem>>, vector<1x8x4xf32>
    %38 = vector.shape_cast %37 : vector<1x8x4xf32> to vector<8x4xf32>
    %39 = vector.extract_strided_slice %1 {offsets = [2, 0], sizes = [1, 128], strides = [1, 1]} : vector<8x128xf32> to vector<1x128xf32>
    %cst_22 = arith.constant 1.000000e+00 : f32
    %40 = vector.broadcast %cst_22 : f32 to vector<8x4xf32>
    %41 = arith.mulf %40, %36 : vector<8x4xf32>
    %42 = vector.extract_strided_slice %3 {offsets = [0, 0], sizes = [4, 128], strides = [1, 1]} : vector<16x128xf32> to vector<4x128xf32>
    %43 = vector.extract_strided_slice %41 {offsets = [0, 0], sizes = [8, 1], strides = [1, 1]} : vector<8x4xf32> to vector<8x1xf32>
    %44 = vector.extract_strided_slice %42 {offsets = [0, 0], sizes = [1, 128], strides = [1, 1]} : vector<4x128xf32> to vector<1x128xf32>
    %45 = vector.broadcast %43 : vector<8x1xf32> to vector<8x128xf32>
    %46 = vector.broadcast %44 : vector<1x128xf32> to vector<8x128xf32>
    %47 = arith.subf %45, %46 : vector<8x128xf32>
    %48 = math.absf %47 : vector<8x128xf32>
    %49 = vector.extract_strided_slice %41 {offsets = [0, 1], sizes = [8, 1], strides = [1, 1]} : vector<8x4xf32> to vector<8x1xf32>
    %50 = vector.extract_strided_slice %42 {offsets = [1, 0], sizes = [1, 128], strides = [1, 1]} : vector<4x128xf32> to vector<1x128xf32>
    %51 = vector.broadcast %49 : vector<8x1xf32> to vector<8x128xf32>
    %52 = vector.broadcast %50 : vector<1x128xf32> to vector<8x128xf32>
    %53 = arith.subf %51, %52 : vector<8x128xf32>
    %54 = math.absf %53 : vector<8x128xf32>
    %55 = arith.addf %48, %54 : vector<8x128xf32>
    %56 = vector.extract_strided_slice %41 {offsets = [0, 2], sizes = [8, 1], strides = [1, 1]} : vector<8x4xf32> to vector<8x1xf32>
    %57 = vector.extract_strided_slice %42 {offsets = [2, 0], sizes = [1, 128], strides = [1, 1]} : vector<4x128xf32> to vector<1x128xf32>
    %58 = vector.broadcast %56 : vector<8x1xf32> to vector<8x128xf32>
    %59 = vector.broadcast %57 : vector<1x128xf32> to vector<8x128xf32>
    %60 = arith.subf %58, %59 : vector<8x128xf32>
    %61 = math.absf %60 : vector<8x128xf32>
    %62 = arith.addf %55, %61 : vector<8x128xf32>
    %63 = vector.extract_strided_slice %41 {offsets = [0, 3], sizes = [8, 1], strides = [1, 1]} : vector<8x4xf32> to vector<8x1xf32>
    %64 = vector.extract_strided_slice %42 {offsets = [3, 0], sizes = [1, 128], strides = [1, 1]} : vector<4x128xf32> to vector<1x128xf32>
    %65 = vector.broadcast %63 : vector<8x1xf32> to vector<8x128xf32>
    %66 = vector.broadcast %64 : vector<1x128xf32> to vector<8x128xf32>
    %67 = arith.subf %65, %66 : vector<8x128xf32>
    %68 = math.absf %67 : vector<8x128xf32>
    %69 = arith.addf %62, %68 : vector<8x128xf32>
    %cst_23 = arith.constant 1.000000e+00 : f32
    %70 = vector.broadcast %cst_23 : f32 to vector<8x4xf32>
    %71 = arith.mulf %70, %38 : vector<8x4xf32>
    %72 = vector.extract_strided_slice %3 {offsets = [4, 0], sizes = [4, 128], strides = [1, 1]} : vector<16x128xf32> to vector<4x128xf32>
    %73 = vector.extract_strided_slice %71 {offsets = [0, 0], sizes = [8, 1], strides = [1, 1]} : vector<8x4xf32> to vector<8x1xf32>
    %74 = vector.extract_strided_slice %72 {offsets = [0, 0], sizes = [1, 128], strides = [1, 1]} : vector<4x128xf32> to vector<1x128xf32>
    %75 = vector.broadcast %73 : vector<8x1xf32> to vector<8x128xf32>
    %76 = vector.broadcast %74 : vector<1x128xf32> to vector<8x128xf32>
    %77 = arith.subf %75, %76 : vector<8x128xf32>
    %78 = math.absf %77 : vector<8x128xf32>
    %79 = vector.extract_strided_slice %71 {offsets = [0, 1], sizes = [8, 1], strides = [1, 1]} : vector<8x4xf32> to vector<8x1xf32>
    %80 = vector.extract_strided_slice %72 {offsets = [1, 0], sizes = [1, 128], strides = [1, 1]} : vector<4x128xf32> to vector<1x128xf32>
    %81 = vector.broadcast %79 : vector<8x1xf32> to vector<8x128xf32>
    %82 = vector.broadcast %80 : vector<1x128xf32> to vector<8x128xf32>
    %83 = arith.subf %81, %82 : vector<8x128xf32>
    %84 = math.absf %83 : vector<8x128xf32>
    %85 = arith.addf %78, %84 : vector<8x128xf32>
    %86 = vector.extract_strided_slice %71 {offsets = [0, 2], sizes = [8, 1], strides = [1, 1]} : vector<8x4xf32> to vector<8x1xf32>
    %87 = vector.extract_strided_slice %72 {offsets = [2, 0], sizes = [1, 128], strides = [1, 1]} : vector<4x128xf32> to vector<1x128xf32>
    %88 = vector.broadcast %86 : vector<8x1xf32> to vector<8x128xf32>
    %89 = vector.broadcast %87 : vector<1x128xf32> to vector<8x128xf32>
    %90 = arith.subf %88, %89 : vector<8x128xf32>
    %91 = math.absf %90 : vector<8x128xf32>
    %92 = arith.addf %85, %91 : vector<8x128xf32>
    %93 = vector.extract_strided_slice %71 {offsets = [0, 3], sizes = [8, 1], strides = [1, 1]} : vector<8x4xf32> to vector<8x1xf32>
    %94 = vector.extract_strided_slice %72 {offsets = [3, 0], sizes = [1, 128], strides = [1, 1]} : vector<4x128xf32> to vector<1x128xf32>
    %95 = vector.broadcast %93 : vector<8x1xf32> to vector<8x128xf32>
    %96 = vector.broadcast %94 : vector<1x128xf32> to vector<8x128xf32>
    %97 = arith.subf %95, %96 : vector<8x128xf32>
    %98 = math.absf %97 : vector<8x128xf32>
    %99 = arith.addf %92, %98 : vector<8x128xf32>
    %100 = vector.broadcast %39 : vector<1x128xf32> to vector<8x128xf32>
    %101 = arith.mulf %99, %100 : vector<8x128xf32>
    %102 = arith.maximumf %69, %101 : vector<8x128xf32>
    %103 = arith.addf %34, %102 : vector<8x128xf32>
    %104 = vector.extract_strided_slice %3 {offsets = [8, 0], sizes = [4, 128], strides = [1, 1]} : vector<16x128xf32> to vector<4x128xf32>
    %105 = vector.extract_strided_slice %1 {offsets = [0, 0], sizes = [1, 128], strides = [1, 1]} : vector<8x128xf32> to vector<1x128xf32>
    %106 = vector.extract_strided_slice %36 {offsets = [0, 0], sizes = [8, 1], strides = [1, 1]} : vector<8x4xf32> to vector<8x1xf32>
    %107 = vector.extract_strided_slice %36 {offsets = [0, 1], sizes = [8, 1], strides = [1, 1]} : vector<8x4xf32> to vector<8x1xf32>
    %108 = vector.extract_strided_slice %36 {offsets = [0, 2], sizes = [8, 1], strides = [1, 1]} : vector<8x4xf32> to vector<8x1xf32>
    %109 = vector.extract_strided_slice %36 {offsets = [0, 3], sizes = [8, 1], strides = [1, 1]} : vector<8x4xf32> to vector<8x1xf32>
    %cst_24 = arith.constant 5.000000e-01 : f32
    %110 = vector.broadcast %cst_24 : f32 to vector<8x1xf32>
    %111 = arith.mulf %110, %108 : vector<8x1xf32>
    %112 = arith.subf %106, %111 : vector<8x1xf32>
    %cst_25 = arith.constant 5.000000e-01 : f32
    %113 = vector.broadcast %cst_25 : f32 to vector<8x1xf32>
    %114 = arith.mulf %113, %109 : vector<8x1xf32>
    %115 = arith.subf %107, %114 : vector<8x1xf32>
    %cst_26 = arith.constant 5.000000e-01 : f32
    %116 = vector.broadcast %cst_26 : f32 to vector<8x1xf32>
    %117 = arith.mulf %116, %108 : vector<8x1xf32>
    %118 = arith.addf %106, %117 : vector<8x1xf32>
    %cst_27 = arith.constant 5.000000e-01 : f32
    %119 = vector.broadcast %cst_27 : f32 to vector<8x1xf32>
    %120 = arith.mulf %119, %109 : vector<8x1xf32>
    %121 = arith.addf %107, %120 : vector<8x1xf32>
    %122 = arith.mulf %108, %109 : vector<8x1xf32>
    %123 = vector.extract_strided_slice %104 {offsets = [0, 0], sizes = [1, 128], strides = [1, 1]} : vector<4x128xf32> to vector<1x128xf32>
    %124 = vector.extract_strided_slice %104 {offsets = [1, 0], sizes = [1, 128], strides = [1, 1]} : vector<4x128xf32> to vector<1x128xf32>
    %125 = vector.extract_strided_slice %104 {offsets = [2, 0], sizes = [1, 128], strides = [1, 1]} : vector<4x128xf32> to vector<1x128xf32>
    %126 = vector.extract_strided_slice %104 {offsets = [3, 0], sizes = [1, 128], strides = [1, 1]} : vector<4x128xf32> to vector<1x128xf32>
    %127 = vector.broadcast %118 : vector<8x1xf32> to vector<8x128xf32>
    %128 = vector.broadcast %125 : vector<1x128xf32> to vector<8x128xf32>
    %129 = arith.minimumf %127, %128 : vector<8x128xf32>
    %130 = vector.broadcast %112 : vector<8x1xf32> to vector<8x128xf32>
    %131 = vector.broadcast %123 : vector<1x128xf32> to vector<8x128xf32>
    %132 = arith.maximumf %130, %131 : vector<8x128xf32>
    %133 = arith.subf %129, %132 : vector<8x128xf32>
    %cst_28 = arith.constant 0.000000e+00 : f32
    %134 = vector.broadcast %cst_28 : f32 to vector<8x128xf32>
    %135 = arith.maximumf %133, %134 : vector<8x128xf32>
    %136 = vector.broadcast %121 : vector<8x1xf32> to vector<8x128xf32>
    %137 = vector.broadcast %126 : vector<1x128xf32> to vector<8x128xf32>
    %138 = arith.minimumf %136, %137 : vector<8x128xf32>
    %139 = vector.broadcast %115 : vector<8x1xf32> to vector<8x128xf32>
    %140 = vector.broadcast %124 : vector<1x128xf32> to vector<8x128xf32>
    %141 = arith.maximumf %139, %140 : vector<8x128xf32>
    %142 = arith.subf %138, %141 : vector<8x128xf32>
    %cst_29 = arith.constant 0.000000e+00 : f32
    %143 = vector.broadcast %cst_29 : f32 to vector<8x128xf32>
    %144 = arith.maximumf %142, %143 : vector<8x128xf32>
    %145 = arith.mulf %135, %144 : vector<8x128xf32>
    %146 = vector.broadcast %122 : vector<8x1xf32> to vector<8x128xf32>
    %147 = vector.broadcast %105 : vector<1x128xf32> to vector<8x128xf32>
    %148 = arith.addf %146, %147 : vector<8x128xf32>
    %149 = arith.subf %148, %145 : vector<8x128xf32>
    %cst_30 = arith.constant 1.000000e-07 : f32
    %150 = vector.broadcast %cst_30 : f32 to vector<8x128xf32>
    %151 = arith.maximumf %149, %150 : vector<8x128xf32>
    %152 = tpu.reciprocal %151 {approx = true} : vector<8x128xf32> -> vector<8x128xf32>
    %153 = arith.mulf %145, %152 : vector<8x128xf32>
    %154 = vector.broadcast %125 : vector<1x128xf32> to vector<8x128xf32>
    %155 = vector.broadcast %118 : vector<8x1xf32> to vector<8x128xf32>
    %156 = arith.maximumf %154, %155 : vector<8x128xf32>
    %157 = vector.broadcast %123 : vector<1x128xf32> to vector<8x128xf32>
    %158 = vector.broadcast %112 : vector<8x1xf32> to vector<8x128xf32>
    %159 = arith.minimumf %157, %158 : vector<8x128xf32>
    %160 = arith.subf %156, %159 : vector<8x128xf32>
    %161 = vector.broadcast %126 : vector<1x128xf32> to vector<8x128xf32>
    %162 = vector.broadcast %121 : vector<8x1xf32> to vector<8x128xf32>
    %163 = arith.maximumf %161, %162 : vector<8x128xf32>
    %164 = vector.broadcast %124 : vector<1x128xf32> to vector<8x128xf32>
    %165 = vector.broadcast %115 : vector<8x1xf32> to vector<8x128xf32>
    %166 = arith.minimumf %164, %165 : vector<8x128xf32>
    %167 = arith.subf %163, %166 : vector<8x128xf32>
    %168 = arith.mulf %160, %167 : vector<8x128xf32>
    %169 = arith.subf %168, %149 : vector<8x128xf32>
    %cst_31 = arith.constant 1.000000e-07 : f32
    %170 = vector.broadcast %cst_31 : f32 to vector<8x128xf32>
    %171 = arith.maximumf %168, %170 : vector<8x128xf32>
    %172 = tpu.reciprocal %171 {approx = true} : vector<8x128xf32> -> vector<8x128xf32>
    %173 = arith.mulf %169, %172 : vector<8x128xf32>
    %174 = arith.subf %173, %153 : vector<8x128xf32>
    %cst_32 = arith.constant 1.000000e+00 : f32
    %175 = vector.broadcast %cst_32 : f32 to vector<8x128xf32>
    %176 = arith.mulf %175, %174 : vector<8x128xf32>
    %177 = vector.extract_strided_slice %3 {offsets = [12, 0], sizes = [4, 128], strides = [1, 1]} : vector<16x128xf32> to vector<4x128xf32>
    %178 = vector.extract_strided_slice %1 {offsets = [1, 0], sizes = [1, 128], strides = [1, 1]} : vector<8x128xf32> to vector<1x128xf32>
    %179 = vector.extract_strided_slice %38 {offsets = [0, 0], sizes = [8, 1], strides = [1, 1]} : vector<8x4xf32> to vector<8x1xf32>
    %180 = vector.extract_strided_slice %38 {offsets = [0, 1], sizes = [8, 1], strides = [1, 1]} : vector<8x4xf32> to vector<8x1xf32>
    %181 = vector.extract_strided_slice %38 {offsets = [0, 2], sizes = [8, 1], strides = [1, 1]} : vector<8x4xf32> to vector<8x1xf32>
    %182 = vector.extract_strided_slice %38 {offsets = [0, 3], sizes = [8, 1], strides = [1, 1]} : vector<8x4xf32> to vector<8x1xf32>
    %cst_33 = arith.constant 5.000000e-01 : f32
    %183 = vector.broadcast %cst_33 : f32 to vector<8x1xf32>
    %184 = arith.mulf %183, %181 : vector<8x1xf32>
    %185 = arith.subf %179, %184 : vector<8x1xf32>
    %cst_34 = arith.constant 5.000000e-01 : f32
    %186 = vector.broadcast %cst_34 : f32 to vector<8x1xf32>
    %187 = arith.mulf %186, %182 : vector<8x1xf32>
    %188 = arith.subf %180, %187 : vector<8x1xf32>
    %cst_35 = arith.constant 5.000000e-01 : f32
    %189 = vector.broadcast %cst_35 : f32 to vector<8x1xf32>
    %190 = arith.mulf %189, %181 : vector<8x1xf32>
    %191 = arith.addf %179, %190 : vector<8x1xf32>
    %cst_36 = arith.constant 5.000000e-01 : f32
    %192 = vector.broadcast %cst_36 : f32 to vector<8x1xf32>
    %193 = arith.mulf %192, %182 : vector<8x1xf32>
    %194 = arith.addf %180, %193 : vector<8x1xf32>
    %195 = arith.mulf %181, %182 : vector<8x1xf32>
    %196 = vector.extract_strided_slice %177 {offsets = [0, 0], sizes = [1, 128], strides = [1, 1]} : vector<4x128xf32> to vector<1x128xf32>
    %197 = vector.extract_strided_slice %177 {offsets = [1, 0], sizes = [1, 128], strides = [1, 1]} : vector<4x128xf32> to vector<1x128xf32>
    %198 = vector.extract_strided_slice %177 {offsets = [2, 0], sizes = [1, 128], strides = [1, 1]} : vector<4x128xf32> to vector<1x128xf32>
    %199 = vector.extract_strided_slice %177 {offsets = [3, 0], sizes = [1, 128], strides = [1, 1]} : vector<4x128xf32> to vector<1x128xf32>
    %200 = vector.broadcast %191 : vector<8x1xf32> to vector<8x128xf32>
    %201 = vector.broadcast %198 : vector<1x128xf32> to vector<8x128xf32>
    %202 = arith.minimumf %200, %201 : vector<8x128xf32>
    %203 = vector.broadcast %185 : vector<8x1xf32> to vector<8x128xf32>
    %204 = vector.broadcast %196 : vector<1x128xf32> to vector<8x128xf32>
    %205 = arith.maximumf %203, %204 : vector<8x128xf32>
    %206 = arith.subf %202, %205 : vector<8x128xf32>
    %cst_37 = arith.constant 0.000000e+00 : f32
    %207 = vector.broadcast %cst_37 : f32 to vector<8x128xf32>
    %208 = arith.maximumf %206, %207 : vector<8x128xf32>
    %209 = vector.broadcast %194 : vector<8x1xf32> to vector<8x128xf32>
    %210 = vector.broadcast %199 : vector<1x128xf32> to vector<8x128xf32>
    %211 = arith.minimumf %209, %210 : vector<8x128xf32>
    %212 = vector.broadcast %188 : vector<8x1xf32> to vector<8x128xf32>
    %213 = vector.broadcast %197 : vector<1x128xf32> to vector<8x128xf32>
    %214 = arith.maximumf %212, %213 : vector<8x128xf32>
    %215 = arith.subf %211, %214 : vector<8x128xf32>
    %cst_38 = arith.constant 0.000000e+00 : f32
    %216 = vector.broadcast %cst_38 : f32 to vector<8x128xf32>
    %217 = arith.maximumf %215, %216 : vector<8x128xf32>
    %218 = arith.mulf %208, %217 : vector<8x128xf32>
    %219 = vector.broadcast %195 : vector<8x1xf32> to vector<8x128xf32>
    %220 = vector.broadcast %178 : vector<1x128xf32> to vector<8x128xf32>
    %221 = arith.addf %219, %220 : vector<8x128xf32>
    %222 = arith.subf %221, %218 : vector<8x128xf32>
    %cst_39 = arith.constant 1.000000e-07 : f32
    %223 = vector.broadcast %cst_39 : f32 to vector<8x128xf32>
    %224 = arith.maximumf %222, %223 : vector<8x128xf32>
    %225 = tpu.reciprocal %224 {approx = true} : vector<8x128xf32> -> vector<8x128xf32>
    %226 = arith.mulf %218, %225 : vector<8x128xf32>
    %227 = vector.broadcast %198 : vector<1x128xf32> to vector<8x128xf32>
    %228 = vector.broadcast %191 : vector<8x1xf32> to vector<8x128xf32>
    %229 = arith.maximumf %227, %228 : vector<8x128xf32>
    %230 = vector.broadcast %196 : vector<1x128xf32> to vector<8x128xf32>
    %231 = vector.broadcast %185 : vector<8x1xf32> to vector<8x128xf32>
    %232 = arith.minimumf %230, %231 : vector<8x128xf32>
    %233 = arith.subf %229, %232 : vector<8x128xf32>
    %234 = vector.broadcast %199 : vector<1x128xf32> to vector<8x128xf32>
    %235 = vector.broadcast %194 : vector<8x1xf32> to vector<8x128xf32>
    %236 = arith.maximumf %234, %235 : vector<8x128xf32>
    %237 = vector.broadcast %197 : vector<1x128xf32> to vector<8x128xf32>
    %238 = vector.broadcast %188 : vector<8x1xf32> to vector<8x128xf32>
    %239 = arith.minimumf %237, %238 : vector<8x128xf32>
    %240 = arith.subf %236, %239 : vector<8x128xf32>
    %241 = arith.mulf %233, %240 : vector<8x128xf32>
    %242 = arith.subf %241, %222 : vector<8x128xf32>
    %cst_40 = arith.constant 1.000000e-07 : f32
    %243 = vector.broadcast %cst_40 : f32 to vector<8x128xf32>
    %244 = arith.maximumf %241, %243 : vector<8x128xf32>
    %245 = tpu.reciprocal %244 {approx = true} : vector<8x128xf32> -> vector<8x128xf32>
    %246 = arith.mulf %242, %245 : vector<8x128xf32>
    %247 = arith.subf %246, %226 : vector<8x128xf32>
    %cst_41 = arith.constant 1.000000e+00 : f32
    %248 = vector.broadcast %cst_41 : f32 to vector<8x128xf32>
    %249 = arith.mulf %248, %247 : vector<8x128xf32>
    %250 = vector.extract_strided_slice %1 {offsets = [3, 0], sizes = [1, 128], strides = [1, 1]} : vector<8x128xf32> to vector<1x128xf32>
    %251 = vector.broadcast %250 : vector<1x128xf32> to vector<8x128xf32>
    %252 = arith.mulf %176, %251 : vector<8x128xf32>
    %253 = arith.addf %249, %252 : vector<8x128xf32>
    %254 = arith.maximumf %176, %253 : vector<8x128xf32>
    %255 = arith.addf %103, %254 : vector<8x128xf32>
    %c0_42 = arith.constant 0 : index
    %c0_43 = arith.constant 0 : index
    %c0_44 = arith.constant 0 : index
    %256 = vector.load %arg8[%c0_42, %c0_43, %c0_44] : memref<1x8x128xf32, #tpu.memory_space<vmem>>, vector<1x8x128xf32>
    %257 = vector.shape_cast %256 : vector<1x8x128xf32> to vector<8x128xf32>
    %258 = vector.shape_cast %255 : vector<8x128xf32> to vector<1x8x128xf32>
    tpu.vector_store %arg8[%c0_42, %c0_43, %c0_44], %258 {strides = array<i32>} : memref<1x8x128xf32, #tpu.memory_space<vmem>>, vector<1x8x128xf32>,
    return
  }
  func.func @transform_0(%arg0: i32, %arg1: i32) -> (i32, i32, i32) {
    %c0_i32 = arith.constant 0 : i32
    %c0_i32_0 = arith.constant 0 : i32
    return %arg0, %arg1, %c0_i32 : i32, i32, i32
  }
  func.func @transform_1(%arg0: i32, %arg1: i32) -> (i32, i32, i32) {
    %c0_i32 = arith.constant 0 : i32
    %c0_i32_0 = arith.constant 0 : i32
    return %arg0, %arg1, %c0_i32 : i32, i32, i32
  }
  func.func @transform_2(%arg0: i32, %arg1: i32) -> (i32, i32, i32) {
    %c0_i32 = arith.constant 0 : i32
    %c0_i32_0 = arith.constant 0 : i32
    return %arg0, %arg1, %c0_i32 : i32, i32, i32
  }
  func.func @transform_3(%arg0: i32, %arg1: i32) -> (i32, i32, i32) {
    %c0_i32 = arith.constant 0 : i32
    %c0_i32_0 = arith.constant 0 : i32
    %c0_i32_1 = arith.constant 0 : i32
    return %arg0, %c0_i32, %c0_i32_0 : i32, i32, i32
  }
  func.func @transform_4(%arg0: i32, %arg1: i32) -> (i32, i32, i32) {
    %c0_i32 = arith.constant 0 : i32
    %c0_i32_0 = arith.constant 0 : i32
    %c0_i32_1 = arith.constant 0 : i32
    return %arg0, %c0_i32, %c0_i32_0 : i32, i32, i32
  }
  func.func @transform_5(%arg0: i32, %arg1: i32) -> (i32, i32, i32) {
    %c0_i32 = arith.constant 0 : i32
    %c0_i32_0 = arith.constant 0 : i32
    %c0_i32_1 = arith.constant 0 : i32
    return %arg0, %c0_i32, %c0_i32_0 : i32, i32, i32
  }
  func.func @transform_6(%arg0: i32, %arg1: i32) -> (i32, i32, i32) {
    %c0_i32 = arith.constant 0 : i32
    %c0_i32_0 = arith.constant 0 : i32
    return %arg0, %arg1, %c0_i32 : i32, i32, i32
  }
}

</mosaic_0001>

<llo_original>
// kernel: tpu_custom_call.1
$region0: #{tpu_custom_call.1}
  #allocation0 [shape = 'u32[]', space=smem, size = 0x4, offset = 0x4, fixed_abs, tag = 'smem constant byte address 0x4 - core index']
  #allocation1 [shape = 'u32[144,128]{1,0:T(1,128)}', space=vmem, size = 0x12000, scoped, tag = 'internal scratch']
  %s0 = inlined_call_operand.vmem [shape: f32[2,8,22], index: 0, kind: input, shape index: {}]
  %s1 = inlined_call_operand.vmem [shape: f32[2,8,4], index: 1, kind: input, shape index: {}]
  %s2 = inlined_call_operand.vmem [shape: f32[2,8,4], index: 2, kind: input, shape index: {}]
  %s3 = inlined_call_operand.vmem [shape: bf16[2,22,128], index: 3, kind: input, shape index: {}]
  %s4 = inlined_call_operand.vmem [shape: f32[2,16,128], index: 4, kind: input, shape index: {}]
  %s5 = inlined_call_operand.vmem [shape: f32[2,8,128], index: 5, kind: input, shape index: {}]
  %s6 = inlined_call_operand.hbm [shape: f32[2,8,128], index: 6, kind: output, shape index: {}]
  %s7 = sld [smem:[#allocation0]]
  $region57: #{tpu_custom_call.1} parent=0
    _
  %s9 = ssub.s32 1, %s7
  %s10 = scalar_select 0, %s9, %s7
  $region1: #{tpu_custom_call.1} parent=0
    #allocation2 [shape = 'u8[8192]{0}', space=vmem, size = 0x2000, scoped, tag = 'output window, operand 0']
    #allocation3 [shape = 's32[2]{0}', space=sflag, size = 0x8, scoped, tag = 'scoped memory for tpu_custom_call.1']
    %11 = vsyncpa [#allocation3], 0
    %s12 = scalar_lea.sflag [#allocation3], 1
    %13 = vsyncpa %s12, 0
    loop: start=0, step=1, limit=4
    $region2: #{tpu_custom_call.1} parent=1 // loop_pre_header
      _
    $region3: #{tpu_custom_call.1} parent=1 // loop_header
      %s15 = sphi 0, %s19
      %p16 = scmp.ge.s32.totalorder %s15, 4
      %s22 = sphi 0, %s34
      %s23 = sphi 0, %s30
      %s24 = sphi 0, %s22
      %s25 = sphi 0, %s23
      %s26 = sphi 0, %s24
      %s27 = sphi 0, %s25
      %s39 = sphi 0, %s41
      %s42 = sphi 0, %s39
      %s43 = sphi 0, %s42
      %s59 = sphi 0, %s43
      %s67 = sphi 0, %s69
      %s70 = sphi 0, %s67
      %s71 = sphi 0, %s70
      %s87 = sphi 0, %s71
      %s95 = sphi 0, %s97
      %s98 = sphi 0, %s95
      %s99 = sphi 0, %s98
      %s115 = sphi 0, %s99
      %s121 = sphi 0, %s123
      %s124 = sphi 0, %s121
      %s125 = sphi 0, %s124
      %s141 = sphi 0, %s125
      %s147 = sphi 0, %s149
      %s150 = sphi 0, %s147
      %s151 = sphi 0, %s150
      %s167 = sphi 0, %s151
      %s173 = sphi 0, %s175
      %s176 = sphi 0, %s173
      %s177 = sphi 0, %s176
      %s193 = sphi 0, %s177
      %s201 = sphi 0, %s203
      %s204 = sphi 0, %s201
      %s205 = sphi 0, %s204
      %s221 = sphi 0, %s205
    $region4: #{tpu_custom_call.1} parent=1 // loop_header_branch
      %18 = sbr.rel (%p16) target = $region8
    $region5: #{tpu_custom_call.1} parent=1 // loop_body
      %s20 = ssub.s32 %s15, 1
      %s21 = ssub.s32 %s15, 2
      %s28 = sadd.s32 1, %s23
      %p29 = scmp.ge.s32.totalorder %s28, 1
      %s30 = scalar_select %p29, 0, %s28
      %s31 = sadd.s32 1, %s22
      %s32 = scalar_select %p29, %s31, %s22
      %p33 = scmp.ge.s32.totalorder %s32, 2
      %s34 = scalar_select %p33, 0, %s32
      %s35 = ssub.s32 %s22, %s34
      %s36 = ssub.s32 %s23, %s30
      %s37 = sor.u32 %s35, %s36
      %p38 = scmp.eq.s32.totalorder %s37, 0
      %s40 = sadd.s32 %s39, 1
      %s41 = scalar_select %p38, %s39, %s40
      %p44 = pneg %p38
      %p45 = scmp.eq.s32.totalorder %s15, 1
      %p46 = por %p44, %p45
      %p47 = scmp.ne.s32.totalorder %s39, %s42
      %p48 = scmp.eq.s32.totalorder %s15, 0
      %p49 = por %p47, %p48
      %p50 = scmp.ne.s32.totalorder %s39, %s42
      %p51 = scmp.eq.s32.totalorder %s20, 1
      %p52 = por %p50, %p51
      %p53 = scmp.ne.s32.totalorder %s42, %s43
      %p54 = scmp.eq.s32.totalorder %s20, 0
      %p55 = por %p53, %p54
      %p56 = scmp.ne.s32.totalorder %s42, %s43
      %p57 = scmp.eq.s32.totalorder %s21, 1
      %p58 = por %p56, %p57
      %p60 = scmp.ne.s32.totalorder %s43, %s59
      %p61 = scmp.eq.s32.totalorder %s21, 0
      %p62 = por %p60, %p61
      %s63 = ssub.s32 %s22, %s34
      %s64 = ssub.s32 %s23, %s30
      %s65 = sor.u32 %s63, %s64
      %p66 = scmp.eq.s32.totalorder %s65, 0
      %s68 = sadd.s32 %s67, 1
      %s69 = scalar_select %p66, %s67, %s68
      %p72 = pneg %p66
      %p73 = scmp.eq.s32.totalorder %s15, 1
      %p74 = por %p72, %p73
      %p75 = scmp.ne.s32.totalorder %s67, %s70
      %p76 = scmp.eq.s32.totalorder %s15, 0
      %p77 = por %p75, %p76
      %p78 = scmp.ne.s32.totalorder %s67, %s70
      %p79 = scmp.eq.s32.totalorder %s20, 1
      %p80 = por %p78, %p79
      %p81 = scmp.ne.s32.totalorder %s70, %s71
      %p82 = scmp.eq.s32.totalorder %s20, 0
      %p83 = por %p81, %p82
      %p84 = scmp.ne.s32.totalorder %s70, %s71
      %p85 = scmp.eq.s32.totalorder %s21, 1
      %p86 = por %p84, %p85
      %p88 = scmp.ne.s32.totalorder %s71, %s87
      %p89 = scmp.eq.s32.totalorder %s21, 0
      %p90 = por %p88, %p89
      %s91 = ssub.s32 %s22, %s34
      %s92 = ssub.s32 %s23, %s30
      %s93 = sor.u32 %s91, %s92
      %p94 = scmp.eq.s32.totalorder %s93, 0
      %s96 = sadd.s32 %s95, 1
      %s97 = scalar_select %p94, %s95, %s96
      %p100 = pneg %p94
      %p101 = scmp.eq.s32.totalorder %s15, 1
      %p102 = por %p100, %p101
      %p103 = scmp.ne.s32.totalorder %s95, %s98
      %p104 = scmp.eq.s32.totalorder %s15, 0
      %p105 = por %p103, %p104
      %p106 = scmp.ne.s32.totalorder %s95, %s98
      %p107 = scmp.eq.s32.totalorder %s20, 1
      %p108 = por %p106, %p107
      %p109 = scmp.ne.s32.totalorder %s98, %s99
      %p110 = scmp.eq.s32.totalorder %s20, 0
      %p111 = por %p109, %p110
      %p112 = scmp.ne.s32.totalorder %s98, %s99
      %p113 = scmp.eq.s32.totalorder %s21, 1
      %p114 = por %p112, %p113
      %p116 = scmp.ne.s32.totalorder %s99, %s115
      %p117 = scmp.eq.s32.totalorder %s21, 0
      %p118 = por %p116, %p117
      %s119 = ssub.s32 %s22, %s34
      %p120 = scmp.eq.s32.totalorder %s119, 0
      %s122 = sadd.s32 %s121, 1
      %s123 = scalar_select %p120, %s121, %s122
      %p126 = pneg %p120
      %p127 = scmp.eq.s32.totalorder %s15, 1
      %p128 = por %p126, %p127
      %p129 = scmp.ne.s32.totalorder %s121, %s124
      %p130 = scmp.eq.s32.totalorder %s15, 0
      %p131 = por %p129, %p130
      %p132 = scmp.ne.s32.totalorder %s121, %s124
      %p133 = scmp.eq.s32.totalorder %s20, 1
      %p134 = por %p132, %p133
      %p135 = scmp.ne.s32.totalorder %s124, %s125
      %p136 = scmp.eq.s32.totalorder %s20, 0
      %p137 = por %p135, %p136
      %p138 = scmp.ne.s32.totalorder %s124, %s125
      %p139 = scmp.eq.s32.totalorder %s21, 1
      %p140 = por %p138, %p139
      %p142 = scmp.ne.s32.totalorder %s125, %s141
      %p143 = scmp.eq.s32.totalorder %s21, 0
      %p144 = por %p142, %p143
      %s145 = ssub.s32 %s22, %s34
      %p146 = scmp.eq.s32.totalorder %s145, 0
      %s148 = sadd.s32 %s147, 1
      %s149 = scalar_select %p146, %s147, %s148
      %p152 = pneg %p146
      %p153 = scmp.eq.s32.totalorder %s15, 1
      %p154 = por %p152, %p153
      %p155 = scmp.ne.s32.totalorder %s147, %s150
      %p156 = scmp.eq.s32.totalorder %s15, 0
      %p157 = por %p155, %p156
      %p158 = scmp.ne.s32.totalorder %s147, %s150
      %p159 = scmp.eq.s32.totalorder %s20, 1
      %p160 = por %p158, %p159
      %p161 = scmp.ne.s32.totalorder %s150, %s151
      %p162 = scmp.eq.s32.totalorder %s20, 0
      %p163 = por %p161, %p162
      %p164 = scmp.ne.s32.totalorder %s150, %s151
      %p165 = scmp.eq.s32.totalorder %s21, 1
      %p166 = por %p164, %p165
      %p168 = scmp.ne.s32.totalorder %s151, %s167
      %p169 = scmp.eq.s32.totalorder %s21, 0
      %p170 = por %p168, %p169
      %s171 = ssub.s32 %s22, %s34
      %p172 = scmp.eq.s32.totalorder %s171, 0
      %s174 = sadd.s32 %s173, 1
      %s175 = scalar_select %p172, %s173, %s174
      %p178 = pneg %p172
      %p179 = scmp.eq.s32.totalorder %s15, 1
      %p180 = por %p178, %p179
      %p181 = scmp.ne.s32.totalorder %s173, %s176
      %p182 = scmp.eq.s32.totalorder %s15, 0
      %p183 = por %p181, %p182
      %p184 = scmp.ne.s32.totalorder %s173, %s176
      %p185 = scmp.eq.s32.totalorder %s20, 1
      %p186 = por %p184, %p185
      %p187 = scmp.ne.s32.totalorder %s176, %s177
      %p188 = scmp.eq.s32.totalorder %s20, 0
      %p189 = por %p187, %p188
      %p190 = scmp.ne.s32.totalorder %s176, %s177
      %p191 = scmp.eq.s32.totalorder %s21, 1
      %p192 = por %p190, %p191
      %p194 = scmp.ne.s32.totalorder %s177, %s193
      %p195 = scmp.eq.s32.totalorder %s21, 0
      %p196 = por %p194, %p195
      %s197 = ssub.s32 %s22, %s34
      %s198 = ssub.s32 %s23, %s30
      %s199 = sor.u32 %s197, %s198
      %p200 = scmp.eq.s32.totalorder %s199, 0
      %s202 = sadd.s32 %s201, 1
      %s203 = scalar_select %p200, %s201, %s202
      %p206 = pneg %p200
      %p207 = scmp.eq.s32.totalorder %s15, 1
      %p208 = por %p206, %p207
      %p209 = scmp.ne.s32.totalorder %s201, %s204
      %p210 = scmp.eq.s32.totalorder %s15, 0
      %p211 = por %p209, %p210
      %p212 = scmp.ne.s32.totalorder %s201, %s204
      %p213 = scmp.eq.s32.totalorder %s20, 1
      %p214 = por %p212, %p213
      %p215 = scmp.ne.s32.totalorder %s204, %s205
      %p216 = scmp.eq.s32.totalorder %s20, 0
      %p217 = por %p215, %p216
      %p218 = scmp.ne.s32.totalorder %s204, %s205
      %p219 = scmp.eq.s32.totalorder %s21, 1
      %p220 = por %p218, %p219
      %p222 = scmp.ne.s32.totalorder %s205, %s221
      %p223 = scmp.eq.s32.totalorder %s21, 0
      %p224 = por %p222, %p223
      %p225 = scmp.le.s32.totalorder 1, %s15
      %p226 = scmp.lt.s32.totalorder %s15, 3
      %p227 = pnand %p225, %p226
      %p228 = pneg %p227
      // Predicated region
      $region9: #{tpu_custom_call.1} parent=5 // pred_check
        _
      $region10: #{tpu_custom_call.1} parent=5 // pred_check_branch
        %230 = sbr.rel (%p227) target = $region12
      $region11: #{tpu_custom_call.1} parent=5 // pred_region
        %s231 = ssub.s32 %s15, 1
      $region12: #{tpu_custom_call.1} parent=5 // pred_fallthru
        _
      %p232 = scmp.lt.s32.totalorder %s15, 2
      // Predicated region
      $region13: #{tpu_custom_call.1} parent=5 // pred_check
        %p233 = pneg %p232
      $region14: #{tpu_custom_call.1} parent=5 // pred_check_branch
        %235 = sbr.rel (%p233) target = $region16
      $region15: #{tpu_custom_call.1} parent=5 // pred_region
        // Predicated region
        $region17: #{tpu_custom_call.1} parent=15 // pred_check
          %p236 = pneg %p49
        $region18: #{tpu_custom_call.1} parent=15 // pred_check_branch
          %238 = sbr.rel (%p236) target = $region20
        $region19: #{tpu_custom_call.1} parent=15 // pred_region
          %p239 = scmp.lt.s32.totalorder %s22, 1
          %s240 = scalar_select %p239, %s22, 1
          %p241 = scmp.lt.s32.totalorder %s23, 0
          %s242 = scalar_select %p241, %s23, 0
          %s243 = sadd.s32 %s242, %s240
          %s244 = smul.addr %s243, 8
          %s245 = scalar_lea.vmem %s0, %s244
        $region20: #{tpu_custom_call.1} parent=15 // pred_fallthru
          _
        // Predicated region
        $region21: #{tpu_custom_call.1} parent=15 // pred_check
          %p246 = pneg %p77
        $region22: #{tpu_custom_call.1} parent=15 // pred_check_branch
          %248 = sbr.rel (%p246) target = $region24
        $region23: #{tpu_custom_call.1} parent=15 // pred_region
          %p249 = scmp.lt.s32.totalorder %s22, 1
          %s250 = scalar_select %p249, %s22, 1
          %p251 = scmp.lt.s32.totalorder %s23, 0
          %s252 = scalar_select %p251, %s23, 0
          %s253 = sadd.s32 %s252, %s250
          %s254 = smul.addr %s253, 8
          %s255 = scalar_lea.vmem %s1, %s254
        $region24: #{tpu_custom_call.1} parent=15 // pred_fallthru
          _
        // Predicated region
        $region25: #{tpu_custom_call.1} parent=15 // pred_check
          %p256 = pneg %p105
        $region26: #{tpu_custom_call.1} parent=15 // pred_check_branch
          %258 = sbr.rel (%p256) target = $region28
        $region27: #{tpu_custom_call.1} parent=15 // pred_region
          %p259 = scmp.lt.s32.totalorder %s22, 1
          %s260 = scalar_select %p259, %s22, 1
          %p261 = scmp.lt.s32.totalorder %s23, 0
          %s262 = scalar_select %p261, %s23, 0
          %s263 = sadd.s32 %s262, %s260
          %s264 = smul.addr %s263, 8
          %s265 = scalar_lea.vmem %s2, %s264
        $region28: #{tpu_custom_call.1} parent=15 // pred_fallthru
          _
        // Predicated region
        $region29: #{tpu_custom_call.1} parent=15 // pred_check
          %p266 = pneg %p131
        $region30: #{tpu_custom_call.1} parent=15 // pred_check_branch
          %268 = sbr.rel (%p266) target = $region32
        $region31: #{tpu_custom_call.1} parent=15 // pred_region
          %p269 = scmp.lt.s32.totalorder %s22, 1
          %s270 = scalar_select %p269, %s22, 1
          %s271 = smul.addr %s270, 3
          %s272 = smul.addr %s271, 4
          %s273 = scalar_lea.vmem %s3, %s272
        $region32: #{tpu_custom_call.1} parent=15 // pred_fallthru
          _
        // Predicated region
        $region33: #{tpu_custom_call.1} parent=15 // pred_check
          %p274 = pneg %p157
        $region34: #{tpu_custom_call.1} parent=15 // pred_check_branch
          %276 = sbr.rel (%p274) target = $region36
        $region35: #{tpu_custom_call.1} parent=15 // pred_region
          %p277 = scmp.lt.s32.totalorder %s22, 1
          %s278 = scalar_select %p277, %s22, 1
          %s279 = smul.addr %s278, 2
          %s280 = smul.addr %s279, 8
          %s281 = scalar_lea.vmem %s4, %s280
        $region36: #{tpu_custom_call.1} parent=15 // pred_fallthru
          _
        // Predicated region
        $region37: #{tpu_custom_call.1} parent=15 // pred_check
          %p282 = pneg %p183
        $region38: #{tpu_custom_call.1} parent=15 // pred_check_branch
          %284 = sbr.rel (%p282) target = $region40
        $region39: #{tpu_custom_call.1} parent=15 // pred_region
          %p285 = scmp.lt.s32.totalorder %s22, 1
          %s286 = scalar_select %p285, %s22, 1
          %s287 = smul.addr %s286, 8
          %s288 = scalar_lea.vmem %s5, %s287
        $region40: #{tpu_custom_call.1} parent=15 // pred_fallthru
          _
      $region16: #{tpu_custom_call.1} parent=5 // pred_fallthru
        _
      %p289 = scmp.le.s32.totalorder 1, %s15
      %p290 = scmp.lt.s32.totalorder %s15, 3
      %p291 = pnand %p289, %p290
      %p292 = pneg %p291
      // Predicated region
      $region41: #{tpu_custom_call.1} parent=5 // pred_check
        _
      $region42: #{tpu_custom_call.1} parent=5 // pred_check_branch
        %294 = sbr.rel (%p291) target = $region44
      $region43: #{tpu_custom_call.1} parent=5 // pred_region
        %s295 = ssub.s32 %s15, 1
        %p296 = scmp.lt.s32.totalorder %s24, 1
        %s297 = scalar_select %p296, %s24, 1
        %p298 = scmp.lt.s32.totalorder %s25, 0
        %s299 = scalar_select %p298, %s25, 0
        %s300 = sadd.s32 %s299, %s297
        %s301 = smul.addr %s300, 8
        %s302 = scalar_lea.vmem %s0, %s301
        %p303 = pneg %p55
        %p304 = pneg %p52
        %p305 = scmp.lt.s32.totalorder %s24, 1
        %s306 = scalar_select %p305, %s24, 1
        %p307 = scmp.lt.s32.totalorder %s25, 0
        %s308 = scalar_select %p307, %s25, 0
        %s309 = sadd.s32 %s308, %s306
        %s310 = smul.addr %s309, 8
        %s311 = scalar_lea.vmem %s1, %s310
        %p312 = pneg %p83
        %p313 = pneg %p80
        %p314 = scmp.lt.s32.totalorder %s24, 1
        %s315 = scalar_select %p314, %s24, 1
        %p316 = scmp.lt.s32.totalorder %s25, 0
        %s317 = scalar_select %p316, %s25, 0
        %s318 = sadd.s32 %s317, %s315
        %s319 = smul.addr %s318, 8
        %s320 = scalar_lea.vmem %s2, %s319
        %p321 = pneg %p111
        %p322 = pneg %p108
        %p323 = scmp.lt.s32.totalorder %s24, 1
        %s324 = scalar_select %p323, %s24, 1
        %s325 = smul.addr %s324, 3
        %s326 = smul.addr %s325, 4
        %s327 = scalar_lea.vmem %s3, %s326
        %p328 = pneg %p137
        %p329 = pneg %p134
        %p330 = scmp.lt.s32.totalorder %s24, 1
        %s331 = scalar_select %p330, %s24, 1
        %s332 = smul.addr %s331, 2
        %s333 = smul.addr %s332, 8
        %s334 = scalar_lea.vmem %s4, %s333
        %p335 = pneg %p163
        %p336 = pneg %p160
        %p337 = scmp.lt.s32.totalorder %s24, 1
        %s338 = scalar_select %p337, %s24, 1
        %s339 = smul.addr %s338, 8
        %s340 = scalar_lea.vmem %s5, %s339
        %p341 = pneg %p189
        %p342 = pneg %p186
        %p343 = pneg %p217
        %p344 = pneg %p214
        %s345 = sand.u32 %s204, 1
        %s346 = scalar_lea.sflag [#allocation3], %s345
        %s347 = sand.u32 %s204, 1
        %s348 = smul.addr %s347, 8
        %s349 = scalar_lea.vmem [#allocation2], %s348
        %p350 = scmp.lt.s32.totalorder %s24, 1
        %s351 = scalar_select %p350, %s24, 1
        %p352 = scmp.lt.s32.totalorder %s25, 0
        %s353 = scalar_select %p352, %s25, 0
        %s354 = sadd.s32 %s353, %s351
        %s355 = smul.addr %s354, 8
        %s356 = scalar_lea.vmem %s0, %s355
        %p357 = scmp.lt.s32.totalorder %s24, 1
        %s358 = scalar_select %p357, %s24, 1
        %p359 = scmp.lt.s32.totalorder %s25, 0
        %s360 = scalar_select %p359, %s25, 0
        %s361 = sadd.s32 %s360, %s358
        %s362 = smul.addr %s361, 8
        %s363 = scalar_lea.vmem %s1, %s362
        %p364 = scmp.lt.s32.totalorder %s24, 1
        %s365 = scalar_select %p364, %s24, 1
        %p366 = scmp.lt.s32.totalorder %s25, 0
        %s367 = scalar_select %p366, %s25, 0
        %s368 = sadd.s32 %s367, %s365
        %s369 = smul.addr %s368, 8
        %s370 = scalar_lea.vmem %s2, %s369
        %p371 = scmp.lt.s32.totalorder %s24, 1
        %s372 = scalar_select %p371, %s24, 1
        %s373 = smul.addr %s372, 3
        %s374 = smul.addr %s373, 4
        %s375 = scalar_lea.vmem %s3, %s374
        %p376 = scmp.lt.s32.totalorder %s24, 1
        %s377 = scalar_select %p376, %s24, 1
        %s378 = smul.addr %s377, 2
        %s379 = smul.addr %s378, 8
        %s380 = scalar_lea.vmem %s4, %s379
        %p381 = scmp.lt.s32.totalorder %s24, 1
        %s382 = scalar_select %p381, %s24, 1
        %s383 = smul.addr %s382, 8
        %s384 = scalar_lea.vmem %s5, %s383
        %v386 = vld [vmem:[%s384] sm:$0xff]
        %v387 = vld [vmem:[%s380] sm:$0xff]
        %v388 = vld [vmem:[%s380 + $0x8] sm:$0xff]
        %v389 = vld [vmem:[%s356] sm:$0xff]
        %v390 = vlaneseq
        %v391 = vand.u32 %v390, 127
        %vm392 = vcmp.lt.s32.totalorder %v391, 12
        %v393 = vsel %vm392, %v389, -1e+30
        %vm394 = vcmask 179200
        %v395 = vsel %vm394, %v393, -inf
        %396 = vmax.xlane.f32.xlu0 %v395
        %v397 = vpop.xlane.xlu0 %396
        %v398 = vsub.f32 %v393, %v397
        %v399 = vmul.f32 %v398, 1.442695
        %v400 = vpow.pop %v399
        %v401 = vsel %vm394, %v400, 0.0
        %402 = vadd.xlane.f32.xlu0 %v401
        %v403 = vpop.xlane.xlu0 %402
        %v404 = vrcp.pop %v403
        %v405 = vmul.f32 %v400, %v404
        %v406 = vsub.f32 0.0, %v389
        %v407 = vmul.f32 %v406, 1.442695
        %v408 = vpow.pop %v407
        %v409 = vadd.f32 %v408, 1.0
        %v410 = vrcp.pop %v409
        %v411 = vsel %vm392, %v405, %v410
        %v412 = vpack.c.bf16 %v411, %v411
        %v413 = vld [vmem:[%s375] sm:$0xf]
        %v414 = vld [vmem:[%s375 + $0x4] sm:$0xf]
        %v415 = vld [vmem:[%s375 + $0x8] sm:$0x7]
        %v416 = vlaneseq
        %v417 = vshrl.u32 %v416, 7
        %v418 = vsub.s32 4, %v417
        %v419 = vrot.slane %v386, %v418
        %v423 = vunpack.c.l.b16 %v413
        %v424 = vunpack.c.l.b16 %v414
        %v425 = vunpack.c.l.b16 %v415
        %v426 = vpack.c.b16 %v424, %v423
        %v427 = vpack.c.b16 %v425, %v425
        %v430 = vsel %vm394, %v412, 0
        %vm432 = vcmask 1042432
        %v434 = vsel %vm432, %v427, 0
        %436 = vmatprep.subr.bf16.mxu0 0
        %437 = vmatpush1.bf16.msra.mxu0 %v426
        %438 = vmatprep.subr.bf16.mxu0 0
        %439 = vmatpush1.bf16.msra.mxu0 %v434
        %440 = vmatprep.subr.bf16.mxu0 0
        %441 = vmatpush1.bf16.msra.mxu0 0
        %442 = vmatprep.subr.bf16.mxu0 0
        %443 = vmatpush1.bf16.msra.mxu0 0
        %444 = vmatprep.subr.bf16.mxu0 0
        %445 = vmatpush1.bf16.msra.mxu0 0
        %446 = vmatprep.subr.bf16.mxu0 0
        %447 = vmatpush1.bf16.msra.mxu0 0
        %448 = vmatprep.subr.bf16.mxu0 0
        %449 = vmatpush1.bf16.msra.mxu0 0
        %450 = vmatprep.subr.bf16.mxu0 0
        %451 = vmatpush1.bf16.msra.mxu0 0
        %452 = vmatprep.subr.bf16.mxu0 0
        %453 = vmatpush1.bf16.msra.mxu0 0
        %454 = vmatprep.subr.bf16.mxu0 0
        %455 = vmatpush1.bf16.msra.mxu0 0
        %456 = vmatprep.subr.bf16.mxu0 0
        %457 = vmatpush1.bf16.msra.mxu0 0
        %458 = vmatprep.subr.bf16.mxu0 0
        %459 = vmatpush1.bf16.msra.mxu0 0
        %460 = vmatprep.subr.bf16.mxu0 0
        %461 = vmatpush1.bf16.msra.mxu0 0
        %462 = vmatprep.subr.bf16.mxu0 0
        %463 = vmatpush1.bf16.msra.mxu0 0
        %464 = vmatprep.subr.bf16.mxu0 0
        %465 = vmatpush1.bf16.msra.mxu0 0
        %466 = vmatprep.subr.bf16.mxu0 0
        %467 = vmatpush1.bf16.msra.mxu0 0
        %468 = vmatprep.mubr.bf16.mxu0 0
        %469 = vmatmul.mubr.bf16.gmra.mrb[0].mxu0 %v430
        %v470 = vpop.f32.mrb[0].mxu0
        %v471 = vadd.f32 %v419, %v470
        %v472 = vpop.f32.mrb[0].mxu0
        %v473 = vpop.f32.mrb[0].mxu0
        %v474 = vpop.f32.mrb[0].mxu0
        %475 = vdwg.mxu0
        %v476 = vld [vmem:[%s363] sm:$0xff]
        %v477 = vld [vmem:[%s370] sm:$0xff]
        %479 = vset.pattern.permute.xlu0 0
        %480 = vperm.xlu0 %479, %v476
        %v481 = vpop.permute.xlu0 %480
        %v483 = vlaneseq
        %v484 = vshrl.u32 %v483, 7
        %v485 = vsub.s32 0, %v484
        %v486 = vrot.slane %v387, %v485
        %v487 = vsub.f32 %v481, %v486
        %v488 = vand.u32 2147483647, %v487
        %489 = vset.pattern.permute.xlu0 1
        %490 = vperm.xlu0 %489, %v476
        %v491 = vpop.permute.xlu0 %490
        %v493 = vlaneseq
        %v494 = vshrl.u32 %v493, 7
        %v495 = vsub.s32 1, %v494
        %v496 = vrot.slane %v387, %v495
        %v497 = vsub.f32 %v491, %v496
        %v498 = vand.u32 2147483647, %v497
        %v499 = vadd.f32 %v488, %v498
        %500 = vset.pattern.permute.xlu0 2
        %501 = vperm.xlu0 %500, %v476
        %v502 = vpop.permute.xlu0 %501
        %v504 = vlaneseq
        %v505 = vshrl.u32 %v504, 7
        %v506 = vsub.s32 2, %v505
        %v507 = vrot.slane %v387, %v506
        %v508 = vsub.f32 %v502, %v507
        %v509 = vand.u32 2147483647, %v508
        %v510 = vadd.f32 %v499, %v509
        %511 = vset.pattern.permute.xlu0 3
        %512 = vperm.xlu0 %511, %v476
        %v513 = vpop.permute.xlu0 %512
        %v515 = vlaneseq
        %v516 = vshrl.u32 %v515, 7
        %v517 = vsub.s32 3, %v516
        %v518 = vrot.slane %v387, %v517
        %v519 = vsub.f32 %v513, %v518
        %v520 = vand.u32 2147483647, %v519
        %v521 = vadd.f32 %v510, %v520
        %523 = vset.pattern.permute.xlu0 0
        %524 = vperm.xlu0 %523, %v477
        %v525 = vpop.permute.xlu0 %524
        %v527 = vlaneseq
        %v528 = vshrl.u32 %v527, 7
        %v529 = vsub.s32 4, %v528
        %v530 = vrot.slane %v387, %v529
        %v531 = vsub.f32 %v525, %v530
        %v532 = vand.u32 2147483647, %v531
        %533 = vset.pattern.permute.xlu0 1
        %534 = vperm.xlu0 %533, %v477
        %v535 = vpop.permute.xlu0 %534
        %v537 = vlaneseq
        %v538 = vshrl.u32 %v537, 7
        %v539 = vsub.s32 5, %v538
        %v540 = vrot.slane %v387, %v539
        %v541 = vsub.f32 %v535, %v540
        %v542 = vand.u32 2147483647, %v541
        %v543 = vadd.f32 %v532, %v542
        %544 = vset.pattern.permute.xlu0 2
        %545 = vperm.xlu0 %544, %v477
        %v546 = vpop.permute.xlu0 %545
        %v548 = vlaneseq
        %v549 = vshrl.u32 %v548, 7
        %v550 = vsub.s32 6, %v549
        %v551 = vrot.slane %v387, %v550
        %v552 = vsub.f32 %v546, %v551
        %v553 = vand.u32 2147483647, %v552
        %v554 = vadd.f32 %v543, %v553
        %555 = vset.pattern.permute.xlu0 3
        %556 = vperm.xlu0 %555, %v477
        %v557 = vpop.permute.xlu0 %556
        %v559 = vlaneseq
        %v560 = vshrl.u32 %v559, 7
        %v561 = vsub.s32 7, %v560
        %v562 = vrot.slane %v387, %v561
        %v563 = vsub.f32 %v557, %v562
        %v564 = vand.u32 2147483647, %v563
        %v565 = vadd.f32 %v554, %v564
        %v566 = vlaneseq
        %v567 = vshrl.u32 %v566, 7
        %v568 = vsub.s32 2, %v567
        %v569 = vrot.slane %v386, %v568
        %v570 = vmul.f32 %v565, %v569
        %v571 = vmax.f32 %v521, %v570
        %v572 = vadd.f32 %v471, %v571
        %v573 = vmul.f32 %v476, 0.5
        %575 = vrot.lane.b32.xlu0 %v573, 126
        %v576 = vpop.permute.xlu0 %575
        %v578 = vsub.f32 %v476, %v576
        %v579 = vadd.f32 %v476, %v576
        %580 = vrot.lane.b32.xlu0 %v476, 127
        %v581 = vpop.permute.xlu0 %580
        %v583 = vmul.f32 %v476, %v581
        %585 = vset.pattern.permute.xlu0 0
        %586 = vperm.xlu0 %585, %v579
        %v587 = vpop.permute.xlu0 %586
        %v589 = vlaneseq
        %v590 = vshrl.u32 %v589, 7
        %v591 = vsub.s32 2, %v590
        %v592 = vrot.slane %v388, %v591
        %v593 = vmin.f32 %v587, %v592
        %595 = vset.pattern.permute.xlu0 0
        %596 = vperm.xlu0 %595, %v578
        %v597 = vpop.permute.xlu0 %596
        %v599 = vlaneseq
        %v600 = vshrl.u32 %v599, 7
        %v601 = vsub.s32 0, %v600
        %v602 = vrot.slane %v388, %v601
        %v603 = vmax.f32 %v597, %v602
        %v604 = vsub.f32 %v593, %v603
        %v605 = vmax.f32 %v604, 0.0
        %606 = vset.pattern.permute.xlu0 1
        %607 = vperm.xlu0 %606, %v579
        %v608 = vpop.permute.xlu0 %607
        %v610 = vlaneseq
        %v611 = vshrl.u32 %v610, 7
        %v612 = vsub.s32 3, %v611
        %v613 = vrot.slane %v388, %v612
        %v614 = vmin.f32 %v608, %v613
        %615 = vset.pattern.permute.xlu0 1
        %616 = vperm.xlu0 %615, %v578
        %v617 = vpop.permute.xlu0 %616
        %v619 = vlaneseq
        %v620 = vshrl.u32 %v619, 7
        %v621 = vsub.s32 1, %v620
        %v622 = vrot.slane %v388, %v621
        %v623 = vmax.f32 %v617, %v622
        %v624 = vsub.f32 %v614, %v623
        %v625 = vmax.f32 %v624, 0.0
        %v626 = vmul.f32 %v605, %v625
        %628 = vset.pattern.permute.xlu0 2
        %629 = vperm.xlu0 %628, %v583
        %v630 = vpop.permute.xlu0 %629
        %v632 = vlaneseq
        %v633 = vshrl.u32 %v632, 7
        %v634 = vsub.s32 0, %v633
        %v635 = vrot.slane %v386, %v634
        %v636 = vadd.f32 %v630, %v635
        %v637 = vsub.f32 %v636, %v626
        %v638 = vmax.f32 %v637, 1e-07
        %v639 = vrcp.pop %v638
        %v640 = vmul.f32 %v626, %v639
        %v641 = vmax.f32 %v592, %v587
        %v642 = vmin.f32 %v602, %v597
        %v643 = vsub.f32 %v641, %v642
        %v644 = vmax.f32 %v613, %v608
        %v645 = vmin.f32 %v622, %v617
        %v646 = vsub.f32 %v644, %v645
        %v647 = vmul.f32 %v643, %v646
        %v648 = vsub.f32 %v647, %v637
        %v649 = vmax.f32 %v647, 1e-07
        %v650 = vrcp.pop %v649
        %v651 = vmul.f32 %v648, %v650
        %v652 = vsub.f32 %v651, %v640
        %v653 = vmul.f32 %v477, 0.5
        %655 = vrot.lane.b32.xlu0 %v653, 126
        %v656 = vpop.permute.xlu0 %655
        %v658 = vsub.f32 %v477, %v656
        %v659 = vadd.f32 %v477, %v656
        %660 = vrot.lane.b32.xlu0 %v477, 127
        %v661 = vpop.permute.xlu0 %660
        %v663 = vmul.f32 %v477, %v661
        %665 = vset.pattern.permute.xlu0 0
        %666 = vperm.xlu0 %665, %v659
        %v667 = vpop.permute.xlu0 %666
        %v669 = vlaneseq
        %v670 = vshrl.u32 %v669, 7
        %v671 = vsub.s32 6, %v670
        %v672 = vrot.slane %v388, %v671
        %v673 = vmin.f32 %v667, %v672
        %675 = vset.pattern.permute.xlu0 0
        %676 = vperm.xlu0 %675, %v658
        %v677 = vpop.permute.xlu0 %676
        %v679 = vlaneseq
        %v680 = vshrl.u32 %v679, 7
        %v681 = vsub.s32 4, %v680
        %v682 = vrot.slane %v388, %v681
        %v683 = vmax.f32 %v677, %v682
        %v684 = vsub.f32 %v673, %v683
        %v685 = vmax.f32 %v684, 0.0
        %686 = vset.pattern.permute.xlu0 1
        %687 = vperm.xlu0 %686, %v659
        %v688 = vpop.permute.xlu0 %687
        %v690 = vlaneseq
        %v691 = vshrl.u32 %v690, 7
        %v692 = vsub.s32 7, %v691
        %v693 = vrot.slane %v388, %v692
        %v694 = vmin.f32 %v688, %v693
        %695 = vset.pattern.permute.xlu0 1
        %696 = vperm.xlu0 %695, %v658
        %v697 = vpop.permute.xlu0 %696
        %v699 = vlaneseq
        %v700 = vshrl.u32 %v699, 7
        %v701 = vsub.s32 5, %v700
        %v702 = vrot.slane %v388, %v701
        %v703 = vmax.f32 %v697, %v702
        %v704 = vsub.f32 %v694, %v703
        %v705 = vmax.f32 %v704, 0.0
        %v706 = vmul.f32 %v685, %v705
        %708 = vset.pattern.permute.xlu0 2
        %709 = vperm.xlu0 %708, %v663
        %v710 = vpop.permute.xlu0 %709
        %v712 = vlaneseq
        %v713 = vshrl.u32 %v712, 7
        %v714 = vsub.s32 1, %v713
        %v715 = vrot.slane %v386, %v714
        %v716 = vadd.f32 %v710, %v715
        %v717 = vsub.f32 %v716, %v706
        %v718 = vmax.f32 %v717, 1e-07
        %v719 = vrcp.pop %v718
        %v720 = vmul.f32 %v706, %v719
        %v721 = vmax.f32 %v672, %v667
        %v722 = vmin.f32 %v682, %v677
        %v723 = vsub.f32 %v721, %v722
        %v724 = vmax.f32 %v693, %v688
        %v725 = vmin.f32 %v702, %v697
        %v726 = vsub.f32 %v724, %v725
        %v727 = vmul.f32 %v723, %v726
        %v728 = vsub.f32 %v727, %v717
        %v729 = vmax.f32 %v727, 1e-07
        %v730 = vrcp.pop %v729
        %v731 = vmul.f32 %v728, %v730
        %v732 = vsub.f32 %v731, %v720
        %v733 = vlaneseq
        %v734 = vshrl.u32 %v733, 7
        %v735 = vsub.s32 3, %v734
        %v736 = vrot.slane %v386, %v735
        %v737 = vmul.f32 %v652, %v736
        %v738 = vadd.f32 %v732, %v737
        %v739 = vmax.f32 %v652, %v738
        %v740 = vadd.f32 %v572, %v739
        %741 = vst [vmem:[%s349] sm:$0xff] %v740
        %s742 = sand.u32 %s204, 1
        %s743 = scalar_lea.sflag [#allocation3], %s742
        %s744 = sand.u32 %s204, 1
        %s745 = smul.addr %s744, 8
        %s746 = scalar_lea.vmem [#allocation2], %s745
        // Predicated region
        $region45: #{tpu_custom_call.1} parent=43 // pred_check
          %p747 = pneg %p214
        $region46: #{tpu_custom_call.1} parent=43 // pred_check_branch
          %749 = sbr.rel (%p747) target = $region48
        $region47: #{tpu_custom_call.1} parent=43 // pred_region
          %s751 = ssub.s32 128, 128
          %752 = vsyncadd %s743, %s751
          %s753 = sadd.s32 %s25, %s24
          %s754 = smul.addr %s753, 128
          %s755 = scalar_lea.hbm %s6, %s754
          %s757 = sshll.u32 %s746, 4
          %s758 = int_to_ptr.vmem [resolvable:$true] %s757
          %760 = dma.vmem_to_hbm [thread:$0]  %s758, 128, %s755, %s743
        $region48: #{tpu_custom_call.1} parent=43 // pred_fallthru
          _
      $region44: #{tpu_custom_call.1} parent=5 // pred_fallthru
        _
      %p761 = scmp.le.s32.totalorder 2, %s15
      // Predicated region
      $region49: #{tpu_custom_call.1} parent=5 // pred_check
        %p762 = pneg %p761
      $region50: #{tpu_custom_call.1} parent=5 // pred_check_branch
        %764 = sbr.rel (%p762) target = $region52
      $region51: #{tpu_custom_call.1} parent=5 // pred_region
        %s765 = ssub.s32 %s15, 2
        // Predicated region
        $region53: #{tpu_custom_call.1} parent=51 // pred_check
          %p766 = pneg %p220
        $region54: #{tpu_custom_call.1} parent=51 // pred_check_branch
          %768 = sbr.rel (%p766) target = $region56
        $region55: #{tpu_custom_call.1} parent=51 // pred_region
          %s769 = sand.u32 %s205, 1
          %s770 = scalar_lea.sflag [#allocation3], %s769
          %s771 = sand.u32 %s205, 1
          %s772 = smul.addr %s771, 8
          %s773 = scalar_lea.vmem [#allocation2], %s772
          %774 = dma.done %s770, 128
        $region56: #{tpu_custom_call.1} parent=51 // pred_fallthru
          _
      $region52: #{tpu_custom_call.1} parent=5 // pred_fallthru
        _
    $region6: #{tpu_custom_call.1} parent=1 // loop_footer
      %s19 = sadd.s32 1, %s15
    $region7: #{tpu_custom_call.1} parent=1 // loop_footer_branch
      %14 = sbr.rel target = $region3
    $region8: #{tpu_custom_call.1} parent=1 // loop_exit
      _
    %775 = vsyncpa [#allocation3], 1
    %s776 = scalar_lea.sflag [#allocation3], 1
    %777 = vsyncpa %s776, 1

</llo_original>
